<compile_context>
chip_gen: v7x
topology: tpu7x:2x2x1
jax: 0.10.0
libtpu: 0.0.40
codegen_flags: <defaults>
</compile_context>

<pallas_src>
import functools

import jax
import jax.numpy as jnp
from jax import lax
from jax.experimental import pallas as pl
from jax.experimental.pallas import tpu as pltpu

SQRT_HALF = 0.7071067811865476


def _ccglu_kernel(xl_ref, xc_ref, xr_ref, w1_ref, w2_ref, bc1_ref, b2_ref, o_ref):
    """One (batch, time-tile) grid step.

    xl/xr : (1, C, 128)  left / right 128-lane halo blocks of x
    xc    : (1, C, TT)   current time tile of x (also the residual)
    w1,w2 : (K, C, C)    per-tap conv weights for the x1 half / gate half
    bc1   : (1, C, 1)    conv bias[:C] + softsign(utt projection)  (per batch)
    b2    : (1, C, 1)    conv bias[C:]
    o     : (1, C, TT)   output tile
    """
    C = xc_ref.shape[1]
    TT = xc_ref.shape[2]
    HW = xl_ref.shape[2]          # halo width (128)
    K = w1_ref.shape[0]
    pad = K // 2
    j = pl.program_id(1)

    xc = xc_ref[0]                                            # (C, TT)
    lane = lax.broadcasted_iota(jnp.int32, (1, TT), 1)

    acc1 = jnp.zeros((C, TT), jnp.float32)
    acc2 = jnp.zeros((C, TT), jnp.float32)
    for k in range(K):                                        # K is static (e.g. 3)
        s = k - pad
        if s == 0:
            x_s = xc
        elif s < 0:                                           # tap needs x[t - a]
            a = -s
            x_s = jnp.concatenate(
                [xl_ref[0, :, HW - a:], xc[:, :TT - a]], axis=1)
            # zero the taps that fall before the start of the sequence
            x_s = jnp.where(j * TT + lane >= a, x_s, 0.0)
        else:                                                 # tap needs x[t + a]
            a = s
            x_s = jnp.concatenate(
                [xc[:, a:], xr_ref[0, :, :a]], axis=1)
            # right-edge overreads only land in columns >= T, which the wrapper
            # discards (x is zero padded so that T_pad >= T + pad).
        acc1 += jnp.dot(w1_ref[k], x_s, preferred_element_type=jnp.float32)
        acc2 += jnp.dot(w2_ref[k], x_s, preferred_element_type=jnp.float32)

    x1 = acc1 + bc1_ref[0]             # (C, 1) broadcast over the lane axis
    gate = acc2 + b2_ref[0]
    y = x1 * jax.nn.sigmoid(gate)
    # TODO(synk): dropout is identity here (eval semantics); a training-mode mask
    # would use pltpu.prng_seed / pltpu.prng_random_bits.
    o_ref[0] = ((xc.astype(jnp.float32) + y) * SQRT_HALF).astype(o_ref.dtype)


@functools.partial(jax.jit, static_argnames=("t_tile",))
def conditional_conv1d_glu(x, utt_emb, conv_w, conv_b, proj_w, proj_b,
                           *, t_tile=512):
    """x: (B, C, T) NCW; utt_emb: (B, U).

    conv_w: (2C, C, K), conv_b: (2C,)   [torch Conv1d layout]
    proj_w: (C, U),     proj_b: (C,)    [torch Linear layout]
    Returns (B, C, T), same dtype as x.
    """
    B, C, T = x.shape
    C2, _, K = conv_w.shape
    assert C2 == 2 * C
    pad = K // 2
    assert pad <= 128, "halo blocks assume kernel_size // 2 <= 128"

    # Conditioning path (tiny): Linear + softsign, folded into the x1-half bias.
    proj = utt_emb.astype(jnp.float32) @ proj_w.T.astype(jnp.float32) + proj_b
    ss = proj / (1.0 + jnp.abs(proj))                                  # softsign
    bc1 = (conv_b[:C][None, :].astype(jnp.float32) + ss)[:, :, None]   # (B, C, 1)
    b2 = conv_b[C:].astype(jnp.float32).reshape(1, C, 1)               # (1, C, 1)

    # Per-tap weight matrices, split into x1 / gate halves.
    w = jnp.transpose(conv_w, (2, 0, 1)).astype(x.dtype)               # (K, 2C, C)
    w1 = w[:, :C, :]                                                   # (K, C, C)
    w2 = w[:, C:, :]                                                   # (K, C, C)

    # Time tiling: lane-dense tiles (multiple of 128), zero padded on the right
    # so every kept output column has its full right halo inside the array.
    t_tile = max(128, 128 * (t_tile // 128))
    tt = min(t_tile, 128 * pl.cdiv(T + pad, 128))
    nj = pl.cdiv(T + pad, tt)
    t_pad = nj * tt
    x_p = jnp.pad(x, ((0, 0), (0, 0), (0, t_pad - T))) if t_pad != T else x

    n128 = tt // 128              # 128-lane blocks per tile
    nb128 = t_pad // 128          # 128-lane blocks per row

    flops = 4 * K * C * C * B * t_pad
    bytes_accessed = 4 * (2 * B * C * t_pad          # x tiles + output
                          + 2 * B * C * 128 * nj     # halo blocks
                          + 2 * K * C * C            # weights
                          + 2 * B * C)               # bias / conditioning
    cost = pl.CostEstimate(flops=flops,
                           transcendentals=B * t_pad * C,
                           bytes_accessed=bytes_accessed)

    out = pl.pallas_call(
        _ccglu_kernel,
        out_shape=jax.ShapeDtypeStruct((B, C, t_pad), x.dtype),
        grid=(B, nj),
        in_specs=[
            # left halo: last 128-lane block of the previous tile (clamped)
            pl.BlockSpec((1, C, 128),
                         lambda b, j: (b, 0, jnp.maximum(j * n128 - 1, 0))),
            # current tile
            pl.BlockSpec((1, C, tt), lambda b, j: (b, 0, j)),
            # right halo: first 128-lane block of the next tile (clamped)
            pl.BlockSpec((1, C, 128),
                         lambda b, j: (b, 0, jnp.minimum((j + 1) * n128, nb128 - 1))),
            pl.BlockSpec((K, C, C), lambda b, j: (0, 0, 0)),
            pl.BlockSpec((K, C, C), lambda b, j: (0, 0, 0)),
            pl.BlockSpec((1, C, 1), lambda b, j: (b, 0, 0)),
            pl.BlockSpec((1, C, 1), lambda b, j: (0, 0, 0)),
        ],
        out_specs=pl.BlockSpec((1, C, tt), lambda b, j: (b, 0, j)),
        compiler_params=pltpu.CompilerParams(
            dimension_semantics=("parallel", "parallel"),
            vmem_limit_bytes=32 * 1024 * 1024),
        cost_estimate=cost,
    )(x_p, x_p, x_p, w1, w2, bc1, b2)

    return out[:, :, :T]


if __name__ == "__main__":
    B, C, T = 2, 4, 16        # batch, in_channels (= out_channels), time
    K = 3                     # kernel_size
    U = 8                     # utt_emb_dim

    key = jax.random.PRNGKey(0)
    kx, ku, kw, kb, kpw, kpb = jax.random.split(key, 6)
    x = jax.random.normal(kx, (B, C, T), dtype=jnp.float32)
    utt_emb = jax.random.normal(ku, (B, U), dtype=jnp.float32)

    # Conv1d(C -> 2C, K) params, PyTorch-style uniform init
    bound = 1.0 / ((C * K) ** 0.5)
    conv_w = jax.random.uniform(kw, (2 * C, C, K), minval=-bound, maxval=bound,
                                dtype=jnp.float32)
    conv_b = jax.random.uniform(kb, (2 * C,), minval=-bound, maxval=bound,
                                dtype=jnp.float32)
    # Linear(U -> C) params
    pbound = 1.0 / (U ** 0.5)
    proj_w = jax.random.uniform(kpw, (C, U), minval=-pbound, maxval=pbound,
                                dtype=jnp.float32)
    proj_b = jax.random.uniform(kpb, (C,), minval=-pbound, maxval=pbound,
                                dtype=jnp.float32)

    y = conditional_conv1d_glu(x, utt_emb, conv_w, conv_b, proj_w, proj_b)
    y = jax.block_until_ready(y)

    # Pure-JAX reference of the full forward (dropout = identity / eval mode).
    pad = K // 2
    conv = lax.conv_general_dilated(
        x, conv_w, window_strides=(1,), padding=[(pad, pad)],
        dimension_numbers=("NCH", "OIH", "NCH"))
    conv = conv + conv_b[None, :, None]
    x1_ref, gate_ref = conv[:, :C, :], conv[:, C:, :]
    proj_ref = utt_emb @ proj_w.T + proj_b
    ss_ref = proj_ref / (1.0 + jnp.abs(proj_ref))
    ref = (x + (x1_ref + ss_ref[:, :, None]) * jax.nn.sigmoid(gate_ref)) * SQRT_HALF

    assert y.shape == (B, C, T)
    assert jnp.allclose(y, ref, atol=1e-5, rtol=1e-5), \
        float(jnp.max(jnp.abs(y - ref)))
    print("KERNEL_OK")
</pallas_src>

<mosaic_0001>
module attributes {stable_mosaic.version = 11 : i64} {
  func.func @_ccglu_kernel(%arg0: i32, %arg1: i32, %arg2: memref<1x4x128xf32, #tpu.memory_space<vmem>>, %arg3: memref<1x4x128xf32, #tpu.memory_space<vmem>>, %arg4: memref<1x4x128xf32, #tpu.memory_space<vmem>>, %arg5: memref<3x4x4xf32, #tpu.memory_space<vmem>>, %arg6: memref<3x4x4xf32, #tpu.memory_space<vmem>>, %arg7: memref<1x4x1xf32, #tpu.memory_space<vmem>>, %arg8: memref<1x4x1xf32, #tpu.memory_space<vmem>>, %arg9: memref<1x4x128xf32, #tpu.memory_space<vmem>>) attributes {dimension_semantics = [#tpu.dimension_semantics<parallel>, #tpu.dimension_semantics<parallel>], iteration_bounds = array<i64: 2, 1>, scalar_prefetch = 0 : i64, scratch_operands = 0 : i64, tpu.core_type = #tpu.core_type<tc>, window_params = [{transform_indices = @transform_0, window_bounds = array<i64: 1, 4, 128>}, {transform_indices = @transform_1, window_bounds = array<i64: 1, 4, 128>}, {transform_indices = @transform_2, window_bounds = array<i64: 1, 4, 128>}, {pipeline_mode = #tpu.pipeline_mode<synchronous>, transform_indices = @transform_3, window_bounds = array<i64: 3, 4, 4>}, {pipeline_mode = #tpu.pipeline_mode<synchronous>, transform_indices = @transform_4, window_bounds = array<i64: 3, 4, 4>}, {transform_indices = @transform_5, window_bounds = array<i64: 1, 4, 1>}, {pipeline_mode = #tpu.pipeline_mode<synchronous>, transform_indices = @transform_6, window_bounds = array<i64: 1, 4, 1>}, {transform_indices = @transform_7, window_bounds = array<i64: 1, 4, 128>}]} {
    %c0 = arith.constant 0 : index
    %c0_0 = arith.constant 0 : index
    %c0_1 = arith.constant 0 : index
    %0 = vector.load %arg3[%c0, %c0_0, %c0_1] : memref<1x4x128xf32, #tpu.memory_space<vmem>>, vector<1x4x128xf32>
    %1 = vector.shape_cast %0 : vector<1x4x128xf32> to vector<4x128xf32>
    %2 = tpu.iota {dimensions = array<i32: 1>} : vector<1x128xi32>
    %cst = arith.constant 0.000000e+00 : f32
    %3 = vector.broadcast %cst : f32 to vector<4x128xf32>
    %cst_2 = arith.constant 0.000000e+00 : f32
    %4 = vector.broadcast %cst_2 : f32 to vector<4x128xf32>
    %c0_3 = arith.constant 0 : index
    %c0_4 = arith.constant 0 : index
    %c127 = arith.constant 127 : index
    %5 = vector.load %arg2[%c0_3, %c0_4, %c127] : memref<1x4x128xf32, #tpu.memory_space<vmem>>, vector<1x4x1xf32>
    %6 = vector.shape_cast %5 : vector<1x4x1xf32> to vector<4x1xf32>
    %7 = vector.extract_strided_slice %1 {offsets = [0, 0], sizes = [4, 127], strides = [1, 1]} : vector<4x128xf32> to vector<4x127xf32>
    %8 = tpu.concatenate %6, %7 in 1 : vector<4x1xf32>, vector<4x127xf32> -> vector<4x128xf32>
    %c128_i32 = arith.constant 128 : i32
    %9 = arith.muli %arg1, %c128_i32 : i32
    %10 = vector.broadcast %9 : i32 to vector<1x128xi32>
    %11 = arith.addi %10, %2 : vector<1x128xi32>
    %c1_i32 = arith.constant 1 : i32
    %12 = vector.broadcast %c1_i32 : i32 to vector<1x128xi32>
    %13 = arith.cmpi sge, %11, %12 : vector<1x128xi32>
    %cst_5 = arith.constant 0.000000e+00 : f32
    %14 = vector.shape_cast %13 : vector<1x128xi1> to vector<1x128xi1>
    %15 = vector.broadcast %14 : vector<1x128xi1> to vector<4x128xi1>
    %16 = vector.broadcast %cst_5 : f32 to vector<4x128xf32>
    %17 = arith.select %15, %8, %16 : vector<4x128xi1>, vector<4x128xf32>
    %c0_6 = arith.constant 0 : index
    %c0_7 = arith.constant 0 : index
    %c0_8 = arith.constant 0 : index
    %18 = vector.load %arg5[%c0_6, %c0_7, %c0_8] : memref<3x4x4xf32, #tpu.memory_space<vmem>>, vector<1x4x4xf32>
    %19 = vector.shape_cast %18 : vector<1x4x4xf32> to vector<4x4xf32>
    %cst_9 = arith.constant dense<0.000000e+00> : vector<4x128xf32>
    %20 = tpu.matmul %19, %17, %cst_9 {dimension_numbers = #tpu.dot_dimension_numbers<[1], [0], [0], [1], [0, 0, 1, 1], [], []>} : vector<4x4xf32>, vector<4x128xf32>, vector<4x128xf32> -> vector<4x128xf32>
    %21 = arith.addf %3, %20 : vector<4x128xf32>
    %c0_10 = arith.constant 0 : index
    %c0_11 = arith.constant 0 : index
    %c0_12 = arith.constant 0 : index
    %22 = vector.load %arg6[%c0_10, %c0_11, %c0_12] : memref<3x4x4xf32, #tpu.memory_space<vmem>>, vector<1x4x4xf32>
    %23 = vector.shape_cast %22 : vector<1x4x4xf32> to vector<4x4xf32>
    %cst_13 = arith.constant dense<0.000000e+00> : vector<4x128xf32>
    %24 = tpu.matmul %23, %17, %cst_13 {dimension_numbers = #tpu.dot_dimension_numbers<[1], [0], [0], [1], [0, 0, 1, 1], [], []>} : vector<4x4xf32>, vector<4x128xf32>, vector<4x128xf32> -> vector<4x128xf32>
    %25 = arith.addf %4, %24 : vector<4x128xf32>
    %c1 = arith.constant 1 : index
    %c0_14 = arith.constant 0 : index
    %c0_15 = arith.constant 0 : index
    %26 = vector.load %arg5[%c1, %c0_14, %c0_15] : memref<3x4x4xf32, #tpu.memory_space<vmem>>, vector<1x4x4xf32>
    %27 = vector.shape_cast %26 : vector<1x4x4xf32> to vector<4x4xf32>
    %cst_16 = arith.constant dense<0.000000e+00> : vector<4x128xf32>
    %28 = tpu.matmul %27, %1, %cst_16 {dimension_numbers = #tpu.dot_dimension_numbers<[1], [0], [0], [1], [0, 0, 1, 1], [], []>} : vector<4x4xf32>, vector<4x128xf32>, vector<4x128xf32> -> vector<4x128xf32>
    %29 = arith.addf %21, %28 : vector<4x128xf32>
    %c1_17 = arith.constant 1 : index
    %c0_18 = arith.constant 0 : index
    %c0_19 = arith.constant 0 : index
    %30 = vector.load %arg6[%c1_17, %c0_18, %c0_19] : memref<3x4x4xf32, #tpu.memory_space<vmem>>, vector<1x4x4xf32>
    %31 = vector.shape_cast %30 : vector<1x4x4xf32> to vector<4x4xf32>
    %cst_20 = arith.constant dense<0.000000e+00> : vector<4x128xf32>
    %32 = tpu.matmul %31, %1, %cst_20 {dimension_numbers = #tpu.dot_dimension_numbers<[1], [0], [0], [1], [0, 0, 1, 1], [], []>} : vector<4x4xf32>, vector<4x128xf32>, vector<4x128xf32> -> vector<4x128xf32>
    %33 = arith.addf %25, %32 : vector<4x128xf32>
    %34 = vector.extract_strided_slice %1 {offsets = [0, 1], sizes = [4, 127], strides = [1, 1]} : vector<4x128xf32> to vector<4x127xf32>
    %c0_21 = arith.constant 0 : index
    %c0_22 = arith.constant 0 : index
    %c0_23 = arith.constant 0 : index
    %35 = vector.load %arg4[%c0_21, %c0_22, %c0_23] : memref<1x4x128xf32, #tpu.memory_space<vmem>>, vector<1x4x1xf32>
    %36 = vector.shape_cast %35 : vector<1x4x1xf32> to vector<4x1xf32>
    %37 = tpu.concatenate %34, %36 in 1 : vector<4x127xf32>, vector<4x1xf32> -> vector<4x128xf32>
    %c2 = arith.constant 2 : index
    %c0_24 = arith.constant 0 : index
    %c0_25 = arith.constant 0 : index
    %38 = vector.load %arg5[%c2, %c0_24, %c0_25] : memref<3x4x4xf32, #tpu.memory_space<vmem>>, vector<1x4x4xf32>
    %39 = vector.shape_cast %38 : vector<1x4x4xf32> to vector<4x4xf32>
    %cst_26 = arith.constant dense<0.000000e+00> : vector<4x128xf32>
    %40 = tpu.matmul %39, %37, %cst_26 {dimension_numbers = #tpu.dot_dimension_numbers<[1], [0], [0], [1], [0, 0, 1, 1], [], []>} : vector<4x4xf32>, vector<4x128xf32>, vector<4x128xf32> -> vector<4x128xf32>
    %41 = arith.addf %29, %40 : vector<4x128xf32>
    %c2_27 = arith.constant 2 : index
    %c0_28 = arith.constant 0 : index
    %c0_29 = arith.constant 0 : index
    %42 = vector.load %arg6[%c2_27, %c0_28, %c0_29] : memref<3x4x4xf32, #tpu.memory_space<vmem>>, vector<1x4x4xf32>
    %43 = vector.shape_cast %42 : vector<1x4x4xf32> to vector<4x4xf32>
    %cst_30 = arith.constant dense<0.000000e+00> : vector<4x128xf32>
    %44 = tpu.matmul %43, %37, %cst_30 {dimension_numbers = #tpu.dot_dimension_numbers<[1], [0], [0], [1], [0, 0, 1, 1], [], []>} : vector<4x4xf32>, vector<4x128xf32>, vector<4x128xf32> -> vector<4x128xf32>
    %45 = arith.addf %33, %44 : vector<4x128xf32>
    %c0_31 = arith.constant 0 : index
    %c0_32 = arith.constant 0 : index
    %c0_33 = arith.constant 0 : index
    %46 = vector.load %arg7[%c0_31, %c0_32, %c0_33] : memref<1x4x1xf32, #tpu.memory_space<vmem>>, vector<1x4x1xf32>
    %47 = vector.shape_cast %46 : vector<1x4x1xf32> to vector<4x1xf32>
    %48 = vector.broadcast %47 : vector<4x1xf32> to vector<4x128xf32>
    %49 = arith.addf %41, %48 : vector<4x128xf32>
    %c0_34 = arith.constant 0 : index
    %c0_35 = arith.constant 0 : index
    %c0_36 = arith.constant 0 : index
    %50 = vector.load %arg8[%c0_34, %c0_35, %c0_36] : memref<1x4x1xf32, #tpu.memory_space<vmem>>, vector<1x4x1xf32>
    %51 = vector.shape_cast %50 : vector<1x4x1xf32> to vector<4x1xf32>
    %52 = vector.broadcast %51 : vector<4x1xf32> to vector<4x128xf32>
    %53 = arith.addf %45, %52 : vector<4x128xf32>
    %54 = arith.negf %53 : vector<4x128xf32>
    %55 = math.exp %54 : vector<4x128xf32>
    %cst_37 = arith.constant 1.000000e+00 : f32
    %56 = vector.broadcast %cst_37 : f32 to vector<4x128xf32>
    %57 = arith.addf %56, %55 : vector<4x128xf32>
    %58 = arith.divf %56, %57 : vector<4x128xf32>
    %59 = arith.mulf %49, %58 : vector<4x128xf32>
    %60 = arith.addf %1, %59 : vector<4x128xf32>
    %cst_38 = arith.constant 0.707106769 : f32
    %61 = vector.broadcast %cst_38 : f32 to vector<4x128xf32>
    %62 = arith.mulf %60, %61 : vector<4x128xf32>
    %c0_39 = arith.constant 0 : index
    %c0_40 = arith.constant 0 : index
    %c0_41 = arith.constant 0 : index
    %63 = vector.load %arg9[%c0_39, %c0_40, %c0_41] : memref<1x4x128xf32, #tpu.memory_space<vmem>>, vector<1x4x128xf32>
    %64 = vector.shape_cast %63 : vector<1x4x128xf32> to vector<4x128xf32>
    %65 = vector.shape_cast %62 : vector<4x128xf32> to vector<1x4x128xf32>
    tpu.vector_store %arg9[%c0_39, %c0_40, %c0_41], %65 {strides = array<i32>} : memref<1x4x128xf32, #tpu.memory_space<vmem>>, vector<1x4x128xf32>,
    return
  }
  func.func @transform_0(%arg0: i32, %arg1: i32) -> (i32, i32, i32) {
    %c1_i32 = arith.constant 1 : i32
    %0 = arith.muli %arg1, %c1_i32 : i32
    %c1_i32_0 = arith.constant 1 : i32
    %1 = arith.subi %0, %c1_i32_0 : i32
    %c0_i32 = arith.constant 0 : i32
    %2 = arith.maxsi %1, %c0_i32 : i32
    %c0_i32_1 = arith.constant 0 : i32
    %c0_i32_2 = arith.constant 0 : i32
    return %arg0, %c0_i32_1, %2 : i32, i32, i32
  }
  func.func @transform_1(%arg0: i32, %arg1: i32) -> (i32, i32, i32) {
    %c0_i32 = arith.constant 0 : i32
    %c0_i32_0 = arith.constant 0 : i32
    return %arg0, %c0_i32, %arg1 : i32, i32, i32
  }
  func.func @transform_2(%arg0: i32, %arg1: i32) -> (i32, i32, i32) {
    %c1_i32 = arith.constant 1 : i32
    %0 = arith.addi %arg1, %c1_i32 : i32
    %c1_i32_0 = arith.constant 1 : i32
    %1 = arith.muli %0, %c1_i32_0 : i32
    %c0_i32 = arith.constant 0 : i32
    %2 = arith.minsi %1, %c0_i32 : i32
    %c0_i32_1 = arith.constant 0 : i32
    %c0_i32_2 = arith.constant 0 : i32
    return %arg0, %c0_i32_1, %2 : i32, i32, i32
  }
  func.func @transform_3(%arg0: i32, %arg1: i32) -> (i32, i32, i32) {
    %c0_i32 = arith.constant 0 : i32
    %c0_i32_0 = arith.constant 0 : i32
    %c0_i32_1 = arith.constant 0 : i32
    %c0_i32_2 = arith.constant 0 : i32
    return %c0_i32, %c0_i32_0, %c0_i32_1 : i32, i32, i32
  }
  func.func @transform_4(%arg0: i32, %arg1: i32) -> (i32, i32, i32) {
    %c0_i32 = arith.constant 0 : i32
    %c0_i32_0 = arith.constant 0 : i32
    %c0_i32_1 = arith.constant 0 : i32
    %c0_i32_2 = arith.constant 0 : i32
    return %c0_i32, %c0_i32_0, %c0_i32_1 : i32, i32, i32
  }
  func.func @transform_5(%arg0: i32, %arg1: i32) -> (i32, i32, i32) {
    %c0_i32 = arith.constant 0 : i32
    %c0_i32_0 = arith.constant 0 : i32
    %c0_i32_1 = arith.constant 0 : i32
    return %arg0, %c0_i32, %c0_i32_0 : i32, i32, i32
  }
  func.func @transform_6(%arg0: i32, %arg1: i32) -> (i32, i32, i32) {
    %c0_i32 = arith.constant 0 : i32
    %c0_i32_0 = arith.constant 0 : i32
    %c0_i32_1 = arith.constant 0 : i32
    %c0_i32_2 = arith.constant 0 : i32
    return %c0_i32, %c0_i32_0, %c0_i32_1 : i32, i32, i32
  }
  func.func @transform_7(%arg0: i32, %arg1: i32) -> (i32, i32, i32) {
    %c0_i32 = arith.constant 0 : i32
    %c0_i32_0 = arith.constant 0 : i32
    return %arg0, %c0_i32, %arg1 : i32, i32, i32
  }
}

</mosaic_0001>

<llo_original>
// kernel: conditional_conv1d_glu.1
$region0: #{conditional_conv1d_glu.1}
  #allocation0 [shape = 'u32[]', space=smem, size = 0x4, offset = 0x4, fixed_abs, tag = 'smem constant byte address 0x4 - core index']
  #allocation1 [shape = 'u32[144,128]{1,0:T(1,128)}', space=vmem, size = 0x12000, scoped, tag = 'internal scratch']
  %s0 = inlined_call_operand.vmem [shape: f32[2,4,128], index: 0, kind: input, shape index: {}, may-alias: {0,1,2}]
  %s1 = inlined_call_operand.vmem [shape: f32[2,4,128], index: 1, kind: input, shape index: {}, may-alias: {0,1,2}]
  %s2 = inlined_call_operand.vmem [shape: f32[2,4,128], index: 2, kind: input, shape index: {}, may-alias: {0,1,2}]
  %s3 = inlined_call_operand.vmem [shape: f32[3,4,4], index: 3, kind: input, shape index: {}]
  %s4 = inlined_call_operand.vmem [shape: f32[3,4,4], index: 4, kind: input, shape index: {}]
  %s5 = inlined_call_operand.vmem [shape: f32[2,4,1], index: 5, kind: input, shape index: {}]
  %s6 = inlined_call_operand.vmem [shape: f32[1,4,1], index: 6, kind: input, shape index: {}]
  %s7 = inlined_call_operand.hbm [shape: f32[2,4,128], index: 7, kind: output, shape index: {}]
  %s8 = sld [smem:[#allocation0]]
  $region61: #{conditional_conv1d_glu.1} parent=0
    _
  %s10 = ssub.s32 1, %s8
  %s11 = scalar_select 0, %s10, %s8
  $region1: #{conditional_conv1d_glu.1} parent=0
    #allocation2 [shape = 'u8[4096]{0}', space=vmem, size = 0x1000, scoped, tag = 'output window, operand 0']
    #allocation3 [shape = 's32[2]{0}', space=sflag, size = 0x8, scoped, tag = 'scoped memory for conditional_conv1d_glu.1']
    %12 = vsyncpa [#allocation3], 0
    %s13 = scalar_lea.sflag [#allocation3], 1
    %14 = vsyncpa %s13, 0
    loop: start=0, step=1, limit=4
    $region2: #{conditional_conv1d_glu.1} parent=1 // loop_pre_header
      _
    $region3: #{conditional_conv1d_glu.1} parent=1 // loop_header
      %s16 = sphi 0, %s20
      %p17 = scmp.ge.s32.totalorder %s16, 4
      %s23 = sphi 0, %s35
      %s24 = sphi 0, %s31
      %s25 = sphi 0, %s23
      %s26 = sphi 0, %s24
      %s27 = sphi 0, %s25
      %s28 = sphi 0, %s26
      %s46 = sphi 0, %s48
      %s49 = sphi 0, %s46
      %s50 = sphi 0, %s49
      %s66 = sphi 0, %s50
      %s74 = sphi 0, %s76
      %s77 = sphi 0, %s74
      %s78 = sphi 0, %s77
      %s94 = sphi 0, %s78
      %s108 = sphi 0, %s110
      %s111 = sphi 0, %s108
      %s112 = sphi 0, %s111
      %s128 = sphi 0, %s112
      %s132 = sphi 0, %s132
      %s134 = sphi 0, %s132
      %s135 = sphi 0, %s134
      %s149 = sphi 0, %s135
      %s153 = sphi 0, %s153
      %s155 = sphi 0, %s153
      %s156 = sphi 0, %s155
      %s170 = sphi 0, %s156
      %s176 = sphi 0, %s178
      %s179 = sphi 0, %s176
      %s180 = sphi 0, %s179
      %s196 = sphi 0, %s180
      %s200 = sphi 0, %s200
      %s202 = sphi 0, %s200
      %s203 = sphi 0, %s202
      %s217 = sphi 0, %s203
      %s225 = sphi 0, %s227
      %s228 = sphi 0, %s225
      %s229 = sphi 0, %s228
      %s245 = sphi 0, %s229
    $region4: #{conditional_conv1d_glu.1} parent=1 // loop_header_branch
      %19 = sbr.rel (%p17) target = $region8
    $region5: #{conditional_conv1d_glu.1} parent=1 // loop_body
      %s21 = ssub.s32 %s16, 1
      %s22 = ssub.s32 %s16, 2
      %s29 = sadd.s32 1, %s24
      %p30 = scmp.ge.s32.totalorder %s29, 1
      %s31 = scalar_select %p30, 0, %s29
      %s32 = sadd.s32 1, %s23
      %s33 = scalar_select %p30, %s32, %s23
      %p34 = scmp.ge.s32.totalorder %s33, 2
      %s35 = scalar_select %p34, 0, %s33
      %s36 = ssub.s32 %s24, 1
      %p37 = scmp.gt.s32.totalorder %s36, 0
      %s38 = scalar_select %p37, %s36, 0
      %s39 = ssub.s32 %s31, 1
      %p40 = scmp.gt.s32.totalorder %s39, 0
      %s41 = scalar_select %p40, %s39, 0
      %s42 = ssub.s32 %s23, %s35
      %s43 = ssub.s32 %s38, %s41
      %s44 = sor.u32 %s42, %s43
      %p45 = scmp.eq.s32.totalorder %s44, 0
      %s47 = sadd.s32 %s46, 1
      %s48 = scalar_select %p45, %s46, %s47
      %p51 = pneg %p45
      %p52 = scmp.eq.s32.totalorder %s16, 1
      %p53 = por %p51, %p52
      %p54 = scmp.ne.s32.totalorder %s46, %s49
      %p55 = scmp.eq.s32.totalorder %s16, 0
      %p56 = por %p54, %p55
      %p57 = scmp.ne.s32.totalorder %s46, %s49
      %p58 = scmp.eq.s32.totalorder %s21, 1
      %p59 = por %p57, %p58
      %p60 = scmp.ne.s32.totalorder %s49, %s50
      %p61 = scmp.eq.s32.totalorder %s21, 0
      %p62 = por %p60, %p61
      %p63 = scmp.ne.s32.totalorder %s49, %s50
      %p64 = scmp.eq.s32.totalorder %s22, 1
      %p65 = por %p63, %p64
      %p67 = scmp.ne.s32.totalorder %s50, %s66
      %p68 = scmp.eq.s32.totalorder %s22, 0
      %p69 = por %p67, %p68
      %s70 = ssub.s32 %s23, %s35
      %s71 = ssub.s32 %s24, %s31
      %s72 = sor.u32 %s70, %s71
      %p73 = scmp.eq.s32.totalorder %s72, 0
      %s75 = sadd.s32 %s74, 1
      %s76 = scalar_select %p73, %s74, %s75
      %p79 = pneg %p73
      %p80 = scmp.eq.s32.totalorder %s16, 1
      %p81 = por %p79, %p80
      %p82 = scmp.ne.s32.totalorder %s74, %s77
      %p83 = scmp.eq.s32.totalorder %s16, 0
      %p84 = por %p82, %p83
      %p85 = scmp.ne.s32.totalorder %s74, %s77
      %p86 = scmp.eq.s32.totalorder %s21, 1
      %p87 = por %p85, %p86
      %p88 = scmp.ne.s32.totalorder %s77, %s78
      %p89 = scmp.eq.s32.totalorder %s21, 0
      %p90 = por %p88, %p89
      %p91 = scmp.ne.s32.totalorder %s77, %s78
      %p92 = scmp.eq.s32.totalorder %s22, 1
      %p93 = por %p91, %p92
      %p95 = scmp.ne.s32.totalorder %s78, %s94
      %p96 = scmp.eq.s32.totalorder %s22, 0
      %p97 = por %p95, %p96
      %s98 = sadd.s32 %s24, 1
      %p99 = scmp.lt.s32.totalorder %s98, 0
      %s100 = scalar_select %p99, %s98, 0
      %s101 = sadd.s32 %s31, 1
      %p102 = scmp.lt.s32.totalorder %s101, 0
      %s103 = scalar_select %p102, %s101, 0
      %s104 = ssub.s32 %s23, %s35
      %s105 = ssub.s32 %s100, %s103
      %s106 = sor.u32 %s104, %s105
      %p107 = scmp.eq.s32.totalorder %s106, 0
      %s109 = sadd.s32 %s108, 1
      %s110 = scalar_select %p107, %s108, %s109
      %p113 = pneg %p107
      %p114 = scmp.eq.s32.totalorder %s16, 1
      %p115 = por %p113, %p114
      %p116 = scmp.ne.s32.totalorder %s108, %s111
      %p117 = scmp.eq.s32.totalorder %s16, 0
      %p118 = por %p116, %p117
      %p119 = scmp.ne.s32.totalorder %s108, %s111
      %p120 = scmp.eq.s32.totalorder %s21, 1
      %p121 = por %p119, %p120
      %p122 = scmp.ne.s32.totalorder %s111, %s112
      %p123 = scmp.eq.s32.totalorder %s21, 0
      %p124 = por %p122, %p123
      %p125 = scmp.ne.s32.totalorder %s111, %s112
      %p126 = scmp.eq.s32.totalorder %s22, 1
      %p127 = por %p125, %p126
      %p129 = scmp.ne.s32.totalorder %s112, %s128
      %p130 = scmp.eq.s32.totalorder %s22, 0
      %p131 = por %p129, %p130
      %s133 = sadd.s32 %s132, 1
      %p136 = scmp.eq.s32.totalorder %s16, 1
      %p137 = scmp.ne.s32.totalorder %s132, %s134
      %p138 = scmp.eq.s32.totalorder %s16, 0
      %p139 = por %p137, %p138
      %p140 = scmp.ne.s32.totalorder %s132, %s134
      %p141 = scmp.eq.s32.totalorder %s21, 1
      %p142 = por %p140, %p141
      %p143 = scmp.ne.s32.totalorder %s134, %s135
      %p144 = scmp.eq.s32.totalorder %s21, 0
      %p145 = por %p143, %p144
      %p146 = scmp.ne.s32.totalorder %s134, %s135
      %p147 = scmp.eq.s32.totalorder %s22, 1
      %p148 = por %p146, %p147
      %p150 = scmp.ne.s32.totalorder %s135, %s149
      %p151 = scmp.eq.s32.totalorder %s22, 0
      %p152 = por %p150, %p151
      %s154 = sadd.s32 %s153, 1
      %p157 = scmp.eq.s32.totalorder %s16, 1
      %p158 = scmp.ne.s32.totalorder %s153, %s155
      %p159 = scmp.eq.s32.totalorder %s16, 0
      %p160 = por %p158, %p159
      %p161 = scmp.ne.s32.totalorder %s153, %s155
      %p162 = scmp.eq.s32.totalorder %s21, 1
      %p163 = por %p161, %p162
      %p164 = scmp.ne.s32.totalorder %s155, %s156
      %p165 = scmp.eq.s32.totalorder %s21, 0
      %p166 = por %p164, %p165
      %p167 = scmp.ne.s32.totalorder %s155, %s156
      %p168 = scmp.eq.s32.totalorder %s22, 1
      %p169 = por %p167, %p168
      %p171 = scmp.ne.s32.totalorder %s156, %s170
      %p172 = scmp.eq.s32.totalorder %s22, 0
      %p173 = por %p171, %p172
      %s174 = ssub.s32 %s23, %s35
      %p175 = scmp.eq.s32.totalorder %s174, 0
      %s177 = sadd.s32 %s176, 1
      %s178 = scalar_select %p175, %s176, %s177
      %p181 = pneg %p175
      %p182 = scmp.eq.s32.totalorder %s16, 1
      %p183 = por %p181, %p182
      %p184 = scmp.ne.s32.totalorder %s176, %s179
      %p185 = scmp.eq.s32.totalorder %s16, 0
      %p186 = por %p184, %p185
      %p187 = scmp.ne.s32.totalorder %s176, %s179
      %p188 = scmp.eq.s32.totalorder %s21, 1
      %p189 = por %p187, %p188
      %p190 = scmp.ne.s32.totalorder %s179, %s180
      %p191 = scmp.eq.s32.totalorder %s21, 0
      %p192 = por %p190, %p191
      %p193 = scmp.ne.s32.totalorder %s179, %s180
      %p194 = scmp.eq.s32.totalorder %s22, 1
      %p195 = por %p193, %p194
      %p197 = scmp.ne.s32.totalorder %s180, %s196
      %p198 = scmp.eq.s32.totalorder %s22, 0
      %p199 = por %p197, %p198
      %s201 = sadd.s32 %s200, 1
      %p204 = scmp.eq.s32.totalorder %s16, 1
      %p205 = scmp.ne.s32.totalorder %s200, %s202
      %p206 = scmp.eq.s32.totalorder %s16, 0
      %p207 = por %p205, %p206
      %p208 = scmp.ne.s32.totalorder %s200, %s202
      %p209 = scmp.eq.s32.totalorder %s21, 1
      %p210 = por %p208, %p209
      %p211 = scmp.ne.s32.totalorder %s202, %s203
      %p212 = scmp.eq.s32.totalorder %s21, 0
      %p213 = por %p211, %p212
      %p214 = scmp.ne.s32.totalorder %s202, %s203
      %p215 = scmp.eq.s32.totalorder %s22, 1
      %p216 = por %p214, %p215
      %p218 = scmp.ne.s32.totalorder %s203, %s217
      %p219 = scmp.eq.s32.totalorder %s22, 0
      %p220 = por %p218, %p219
      %s221 = ssub.s32 %s23, %s35
      %s222 = ssub.s32 %s24, %s31
      %s223 = sor.u32 %s221, %s222
      %p224 = scmp.eq.s32.totalorder %s223, 0
      %s226 = sadd.s32 %s225, 1
      %s227 = scalar_select %p224, %s225, %s226
      %p230 = pneg %p224
      %p231 = scmp.eq.s32.totalorder %s16, 1
      %p232 = por %p230, %p231
      %p233 = scmp.ne.s32.totalorder %s225, %s228
      %p234 = scmp.eq.s32.totalorder %s16, 0
      %p235 = por %p233, %p234
      %p236 = scmp.ne.s32.totalorder %s225, %s228
      %p237 = scmp.eq.s32.totalorder %s21, 1
      %p238 = por %p236, %p237
      %p239 = scmp.ne.s32.totalorder %s228, %s229
      %p240 = scmp.eq.s32.totalorder %s21, 0
      %p241 = por %p239, %p240
      %p242 = scmp.ne.s32.totalorder %s228, %s229
      %p243 = scmp.eq.s32.totalorder %s22, 1
      %p244 = por %p242, %p243
      %p246 = scmp.ne.s32.totalorder %s229, %s245
      %p247 = scmp.eq.s32.totalorder %s22, 0
      %p248 = por %p246, %p247
      %p249 = scmp.le.s32.totalorder 1, %s16
      %p250 = scmp.lt.s32.totalorder %s16, 3
      %p251 = pnand %p249, %p250
      %p252 = pneg %p251
      // Predicated region
      $region9: #{conditional_conv1d_glu.1} parent=5 // pred_check
        _
      $region10: #{conditional_conv1d_glu.1} parent=5 // pred_check_branch
        %254 = sbr.rel (%p251) target = $region12
      $region11: #{conditional_conv1d_glu.1} parent=5 // pred_region
        %s255 = ssub.s32 %s16, 1
        // Predicated region
        $region13: #{conditional_conv1d_glu.1} parent=11 // pred_check
          %p256 = pneg %p145
        $region14: #{conditional_conv1d_glu.1} parent=11 // pred_check_branch
          %258 = sbr.rel (%p256) target = $region16
        $region15: #{conditional_conv1d_glu.1} parent=11 // pred_region
          _
        $region16: #{conditional_conv1d_glu.1} parent=11 // pred_fallthru
          _
        // Predicated region
        $region17: #{conditional_conv1d_glu.1} parent=11 // pred_check
          %p259 = pneg %p166
        $region18: #{conditional_conv1d_glu.1} parent=11 // pred_check_branch
          %261 = sbr.rel (%p259) target = $region20
        $region19: #{conditional_conv1d_glu.1} parent=11 // pred_region
          _
        $region20: #{conditional_conv1d_glu.1} parent=11 // pred_fallthru
          _
        // Predicated region
        $region21: #{conditional_conv1d_glu.1} parent=11 // pred_check
          %p262 = pneg %p213
        $region22: #{conditional_conv1d_glu.1} parent=11 // pred_check_branch
          %264 = sbr.rel (%p262) target = $region24
        $region23: #{conditional_conv1d_glu.1} parent=11 // pred_region
          _
        $region24: #{conditional_conv1d_glu.1} parent=11 // pred_fallthru
          _
      $region12: #{conditional_conv1d_glu.1} parent=5 // pred_fallthru
        _
      %p265 = scmp.lt.s32.totalorder %s16, 2
      // Predicated region
      $region25: #{conditional_conv1d_glu.1} parent=5 // pred_check
        %p266 = pneg %p265
      $region26: #{conditional_conv1d_glu.1} parent=5 // pred_check_branch
        %268 = sbr.rel (%p266) target = $region28
      $region27: #{conditional_conv1d_glu.1} parent=5 // pred_region
        // Predicated region
        $region29: #{conditional_conv1d_glu.1} parent=27 // pred_check
          %p269 = pneg %p56
        $region30: #{conditional_conv1d_glu.1} parent=27 // pred_check_branch
          %271 = sbr.rel (%p269) target = $region32
        $region31: #{conditional_conv1d_glu.1} parent=27 // pred_region
          %s272 = ssub.s32 %s24, 1
          %p273 = scmp.gt.s32.totalorder %s272, 0
          %s274 = scalar_select %p273, %s272, 0
          %p275 = scmp.lt.s32.totalorder %s23, 1
          %s276 = scalar_select %p275, %s23, 1
          %p277 = scmp.lt.s32.totalorder %s274, 0
          %s278 = scalar_select %p277, %s274, 0
          %s279 = sadd.s32 %s278, %s276
          %s280 = smul.addr %s279, 4
          %s281 = scalar_lea.vmem %s0, %s280
          %s282 = ssub.s32 %s24, 1
          %p283 = scmp.gt.s32.totalorder %s282, 0
          %s284 = scalar_select %p283, %s282, 0
        $region32: #{conditional_conv1d_glu.1} parent=27 // pred_fallthru
          _
        // Predicated region
        $region33: #{conditional_conv1d_glu.1} parent=27 // pred_check
          %p285 = pneg %p84
        $region34: #{conditional_conv1d_glu.1} parent=27 // pred_check_branch
          %287 = sbr.rel (%p285) target = $region36
        $region35: #{conditional_conv1d_glu.1} parent=27 // pred_region
          %p288 = scmp.lt.s32.totalorder %s23, 1
          %s289 = scalar_select %p288, %s23, 1
          %p290 = scmp.lt.s32.totalorder %s24, 0
          %s291 = scalar_select %p290, %s24, 0
          %s292 = sadd.s32 %s291, %s289
          %s293 = smul.addr %s292, 4
          %s294 = scalar_lea.vmem %s1, %s293
        $region36: #{conditional_conv1d_glu.1} parent=27 // pred_fallthru
          _
        // Predicated region
        $region37: #{conditional_conv1d_glu.1} parent=27 // pred_check
          %p295 = pneg %p118
        $region38: #{conditional_conv1d_glu.1} parent=27 // pred_check_branch
          %297 = sbr.rel (%p295) target = $region40
        $region39: #{conditional_conv1d_glu.1} parent=27 // pred_region
          %s298 = sadd.s32 %s24, 1
          %p299 = scmp.lt.s32.totalorder %s298, 0
          %s300 = scalar_select %p299, %s298, 0
          %p301 = scmp.lt.s32.totalorder %s23, 1
          %s302 = scalar_select %p301, %s23, 1
          %p303 = scmp.lt.s32.totalorder %s300, 0
          %s304 = scalar_select %p303, %s300, 0
          %s305 = sadd.s32 %s304, %s302
          %s306 = smul.addr %s305, 4
          %s307 = scalar_lea.vmem %s2, %s306
          %s308 = sadd.s32 %s24, 1
          %p309 = scmp.lt.s32.totalorder %s308, 0
          %s310 = scalar_select %p309, %s308, 0
        $region40: #{conditional_conv1d_glu.1} parent=27 // pred_fallthru
          _
        // Predicated region
        $region41: #{conditional_conv1d_glu.1} parent=27 // pred_check
          %p311 = pneg %p186
        $region42: #{conditional_conv1d_glu.1} parent=27 // pred_check_branch
          %313 = sbr.rel (%p311) target = $region44
        $region43: #{conditional_conv1d_glu.1} parent=27 // pred_region
          %p314 = scmp.lt.s32.totalorder %s23, 1
          %s315 = scalar_select %p314, %s23, 1
          %s316 = smul.addr %s315, 4
          %s317 = scalar_lea.vmem %s5, %s316
        $region44: #{conditional_conv1d_glu.1} parent=27 // pred_fallthru
          _
      $region28: #{conditional_conv1d_glu.1} parent=5 // pred_fallthru
        _
      %p318 = scmp.le.s32.totalorder 1, %s16
      %p319 = scmp.lt.s32.totalorder %s16, 3
      %p320 = pnand %p318, %p319
      %p321 = pneg %p320
      // Predicated region
      $region45: #{conditional_conv1d_glu.1} parent=5 // pred_check
        _
      $region46: #{conditional_conv1d_glu.1} parent=5 // pred_check_branch
        %323 = sbr.rel (%p320) target = $region48
      $region47: #{conditional_conv1d_glu.1} parent=5 // pred_region
        %s324 = ssub.s32 %s16, 1
        %s325 = ssub.s32 %s26, 1
        %p326 = scmp.gt.s32.totalorder %s325, 0
        %s327 = scalar_select %p326, %s325, 0
        %p328 = scmp.lt.s32.totalorder %s25, 1
        %s329 = scalar_select %p328, %s25, 1
        %p330 = scmp.lt.s32.totalorder %s327, 0
        %s331 = scalar_select %p330, %s327, 0
        %s332 = sadd.s32 %s331, %s329
        %s333 = smul.addr %s332, 4
        %s334 = scalar_lea.vmem %s0, %s333
        %p335 = pneg %p62
        %p336 = pneg %p59
        %p337 = scmp.lt.s32.totalorder %s25, 1
        %s338 = scalar_select %p337, %s25, 1
        %p339 = scmp.lt.s32.totalorder %s26, 0
        %s340 = scalar_select %p339, %s26, 0
        %s341 = sadd.s32 %s340, %s338
        %s342 = smul.addr %s341, 4
        %s343 = scalar_lea.vmem %s1, %s342
        %p344 = pneg %p90
        %p345 = pneg %p87
        %s346 = sadd.s32 %s26, 1
        %p347 = scmp.lt.s32.totalorder %s346, 0
        %s348 = scalar_select %p347, %s346, 0
        %p349 = scmp.lt.s32.totalorder %s25, 1
        %s350 = scalar_select %p349, %s25, 1
        %p351 = scmp.lt.s32.totalorder %s348, 0
        %s352 = scalar_select %p351, %s348, 0
        %s353 = sadd.s32 %s352, %s350
        %s354 = smul.addr %s353, 4
        %s355 = scalar_lea.vmem %s2, %s354
        %p356 = pneg %p124
        %p357 = pneg %p121
        %p358 = pneg %p145
        %p359 = pneg %p142
        %p360 = pneg %p166
        %p361 = pneg %p163
        %p362 = scmp.lt.s32.totalorder %s25, 1
        %s363 = scalar_select %p362, %s25, 1
        %s364 = smul.addr %s363, 4
        %s365 = scalar_lea.vmem %s5, %s364
        %p366 = pneg %p192
        %p367 = pneg %p189
        %p368 = pneg %p213
        %p369 = pneg %p210
        %p370 = pneg %p241
        %p371 = pneg %p238
        %s372 = sand.u32 %s228, 1
        %s373 = scalar_lea.sflag [#allocation3], %s372
        %s374 = sand.u32 %s228, 1
        %s375 = smul.addr %s374, 4
        %s376 = scalar_lea.vmem [#allocation2], %s375
        %s377 = ssub.s32 %s26, 1
        %p378 = scmp.gt.s32.totalorder %s377, 0
        %s379 = scalar_select %p378, %s377, 0
        %p380 = scmp.lt.s32.totalorder %s25, 1
        %s381 = scalar_select %p380, %s25, 1
        %p382 = scmp.lt.s32.totalorder %s379, 0
        %s383 = scalar_select %p382, %s379, 0
        %s384 = sadd.s32 %s383, %s381
        %s385 = smul.addr %s384, 4
        %s386 = scalar_lea.vmem %s0, %s385
        %s387 = ssub.s32 %s26, 1
        %p388 = scmp.gt.s32.totalorder %s387, 0
        %s389 = scalar_select %p388, %s387, 0
        %p390 = scmp.lt.s32.totalorder %s25, 1
        %s391 = scalar_select %p390, %s25, 1
        %p392 = scmp.lt.s32.totalorder %s26, 0
        %s393 = scalar_select %p392, %s26, 0
        %s394 = sadd.s32 %s393, %s391
        %s395 = smul.addr %s394, 4
        %s396 = scalar_lea.vmem %s1, %s395
        %s397 = sadd.s32 %s26, 1
        %p398 = scmp.lt.s32.totalorder %s397, 0
        %s399 = scalar_select %p398, %s397, 0
        %p400 = scmp.lt.s32.totalorder %s25, 1
        %s401 = scalar_select %p400, %s25, 1
        %p402 = scmp.lt.s32.totalorder %s399, 0
        %s403 = scalar_select %p402, %s399, 0
        %s404 = sadd.s32 %s403, %s401
        %s405 = smul.addr %s404, 4
        %s406 = scalar_lea.vmem %s2, %s405
        %s407 = sadd.s32 %s26, 1
        %p408 = scmp.lt.s32.totalorder %s407, 0
        %s409 = scalar_select %p408, %s407, 0
        %p410 = scmp.lt.s32.totalorder %s25, 1
        %s411 = scalar_select %p410, %s25, 1
        %s412 = smul.addr %s411, 4
        %s413 = scalar_lea.vmem %s5, %s412
        %v414 = vld [vmem:[%s396] sm:$0xf]
        %v415 = vlaneseq
        %v416 = vand.u32 %v415, 127
        %v417 = vld [vmem:[%s386] sm:$0xf]
        %419 = vrot.lane.b32.xlu0 %v417, 1
        %v420 = vpop.permute.xlu0 %419
        %423 = vrot.lane.b32.xlu0 %v414, 1
        %v424 = vpop.permute.xlu0 %423
        %vm426 = vcmask 7168
        %v427 = vsel %vm426, %v420, %v424
        %s428 = smul.u32 %s26, 128
        %v429 = vstv %s428
        %v430 = vadd.s32 %v429, %v416
        %vm431 = vcmp.ge.s32.totalorder %v430, 1
        %v432 = vsel %vm431, 1, 0
        %vm433 = vcmp.eq.s32.totalorder %v432, 1
        %v434 = vsel %vm433, %v427, 0.0
        %v435 = vld [vmem:[%s3] sm:$0xf]
        %v436 = vld [vmem:[%s4] sm:$0xf]
        %s437 = scalar_lea.vmem %s3, 4
        %v438 = vld [vmem:[%s437] sm:$0xf]
        %vm439 = vcmask 31744
        %v441 = vsel %vm439, %v438, 0
        %vm443 = vcmask 1043456
        %v444 = vsel %vm443, %v414, 0
        %446 = vmatprep.subr.mxu0 0.0
        %447 = vmatpush1.msra.mxu0 %v444
        %448 = vmatprep.subr.mxu0 0.0
        %449 = vmatpush1.msra.mxu0 0.0
        %450 = vmatprep.subr.mxu0 0.0
        %451 = vmatpush1.msra.mxu0 0.0
        %452 = vmatprep.subr.mxu0 0.0
        %453 = vmatpush1.msra.mxu0 0.0
        %454 = vmatprep.subr.mxu0 0.0
        %455 = vmatpush1.msra.mxu0 0.0
        %456 = vmatprep.subr.mxu0 0.0
        %457 = vmatpush1.msra.mxu0 0.0
        %458 = vmatprep.subr.mxu0 0.0
        %459 = vmatpush1.msra.mxu0 0.0
        %460 = vmatprep.subr.mxu0 0.0
        %461 = vmatpush1.msra.mxu0 0.0
        %462 = vmatprep.subr.mxu0 0.0
        %463 = vmatpush1.msra.mxu0 0.0
        %464 = vmatprep.subr.mxu0 0.0
        %465 = vmatpush1.msra.mxu0 0.0
        %466 = vmatprep.subr.mxu0 0.0
        %467 = vmatpush1.msra.mxu0 0.0
        %468 = vmatprep.subr.mxu0 0.0
        %469 = vmatpush1.msra.mxu0 0.0
        %470 = vmatprep.subr.mxu0 0.0
        %471 = vmatpush1.msra.mxu0 0.0
        %472 = vmatprep.subr.mxu0 0.0
        %473 = vmatpush1.msra.mxu0 0.0
        %474 = vmatprep.subr.mxu0 0.0
        %475 = vmatpush1.msra.mxu0 0.0
        %476 = vmatprep.subr.mxu0 0.0
        %477 = vmatpush1.msra.mxu0 0.0
        %478 = vmatprep.subr.mxu0 0.0
        %479 = vmatpush1.msra.mxu0 0.0
        %480 = vmatprep.subr.mxu0 0.0
        %481 = vmatpush1.msra.mxu0 0.0
        %482 = vmatprep.subr.mxu0 0.0
        %483 = vmatpush1.msra.mxu0 0.0
        %484 = vmatprep.subr.mxu0 0.0
        %485 = vmatpush1.msra.mxu0 0.0
        %486 = vmatprep.subr.mxu0 0.0
        %487 = vmatpush1.msra.mxu0 0.0
        %488 = vmatprep.subr.mxu0 0.0
        %489 = vmatpush1.msra.mxu0 0.0
        %490 = vmatprep.subr.mxu0 0.0
        %491 = vmatpush1.msra.mxu0 0.0
        %492 = vmatprep.subr.mxu0 0.0
        %493 = vmatpush1.msra.mxu0 0.0
        %494 = vmatprep.subr.mxu0 0.0
        %495 = vmatpush1.msra.mxu0 0.0
        %496 = vmatprep.subr.mxu0 0.0
        %497 = vmatpush1.msra.mxu0 0.0
        %498 = vmatprep.subr.mxu0 0.0
        %499 = vmatpush1.msra.mxu0 0.0
        %500 = vmatprep.subr.mxu0 0.0
        %501 = vmatpush1.msra.mxu0 0.0
        %502 = vmatprep.subr.mxu0 0.0
        %503 = vmatpush1.msra.mxu0 0.0
        %504 = vmatprep.subr.mxu0 0.0
        %505 = vmatpush1.msra.mxu0 0.0
        %506 = vmatprep.subr.mxu0 0.0
        %507 = vmatpush1.msra.mxu0 0.0
        %508 = vmatprep.subr.mxu0 0.0
        %509 = vmatpush1.msra.mxu0 0.0
        %510 = vmatprep.mubr.f32.mxu0 0.0
        %511 = vmatmul.mubr.f32.gmra.mrb[0].mxu0 %v441
        %v512 = vpop.f32.mrb[0].mxu0
        %v513 = vadd.f32 0.0, %v512
        %v514 = vpop.f32.mrb[0].mxu0
        %515 = vdwg.mxu0
        %v517 = vsel %vm439, %v435, 0
        %v520 = vsel %vm443, %v434, 0
        %522 = vmatprep.subr.mxu0 0.0
        %523 = vmatpush1.msra.mxu0 %v520
        %524 = vmatprep.subr.mxu0 0.0
        %525 = vmatpush1.msra.mxu0 0.0
        %526 = vmatprep.subr.mxu0 0.0
        %527 = vmatpush1.msra.mxu0 0.0
        %528 = vmatprep.subr.mxu0 0.0
        %529 = vmatpush1.msra.mxu0 0.0
        %530 = vmatprep.subr.mxu0 0.0
        %531 = vmatpush1.msra.mxu0 0.0
        %532 = vmatprep.subr.mxu0 0.0
        %533 = vmatpush1.msra.mxu0 0.0
        %534 = vmatprep.subr.mxu0 0.0
        %535 = vmatpush1.msra.mxu0 0.0
        %536 = vmatprep.subr.mxu0 0.0
        %537 = vmatpush1.msra.mxu0 0.0
        %538 = vmatprep.subr.mxu0 0.0
        %539 = vmatpush1.msra.mxu0 0.0
        %540 = vmatprep.subr.mxu0 0.0
        %541 = vmatpush1.msra.mxu0 0.0
        %542 = vmatprep.subr.mxu0 0.0
        %543 = vmatpush1.msra.mxu0 0.0
        %544 = vmatprep.subr.mxu0 0.0
        %545 = vmatpush1.msra.mxu0 0.0
        %546 = vmatprep.subr.mxu0 0.0
        %547 = vmatpush1.msra.mxu0 0.0
        %548 = vmatprep.subr.mxu0 0.0
        %549 = vmatpush1.msra.mxu0 0.0
        %550 = vmatprep.subr.mxu0 0.0
        %551 = vmatpush1.msra.mxu0 0.0
        %552 = vmatprep.subr.mxu0 0.0
        %553 = vmatpush1.msra.mxu0 0.0
        %554 = vmatprep.subr.mxu0 0.0
        %555 = vmatpush1.msra.mxu0 0.0
        %556 = vmatprep.subr.mxu0 0.0
        %557 = vmatpush1.msra.mxu0 0.0
        %558 = vmatprep.subr.mxu0 0.0
        %559 = vmatpush1.msra.mxu0 0.0
        %560 = vmatprep.subr.mxu0 0.0
        %561 = vmatpush1.msra.mxu0 0.0
        %562 = vmatprep.subr.mxu0 0.0
        %563 = vmatpush1.msra.mxu0 0.0
        %564 = vmatprep.subr.mxu0 0.0
        %565 = vmatpush1.msra.mxu0 0.0
        %566 = vmatprep.subr.mxu0 0.0
        %567 = vmatpush1.msra.mxu0 0.0
        %568 = vmatprep.subr.mxu0 0.0
        %569 = vmatpush1.msra.mxu0 0.0
        %570 = vmatprep.subr.mxu0 0.0
        %571 = vmatpush1.msra.mxu0 0.0
        %572 = vmatprep.subr.mxu0 0.0
        %573 = vmatpush1.msra.mxu0 0.0
        %574 = vmatprep.subr.mxu0 0.0
        %575 = vmatpush1.msra.mxu0 0.0
        %576 = vmatprep.subr.mxu0 0.0
        %577 = vmatpush1.msra.mxu0 0.0
        %578 = vmatprep.subr.mxu0 0.0
        %579 = vmatpush1.msra.mxu0 0.0
        %580 = vmatprep.subr.mxu0 0.0
        %581 = vmatpush1.msra.mxu0 0.0
        %582 = vmatprep.subr.mxu0 0.0
        %583 = vmatpush1.msra.mxu0 0.0
        %584 = vmatprep.subr.mxu0 0.0
        %585 = vmatpush1.msra.mxu0 0.0
        %586 = vmatprep.mubr.f32.mxu0 0.0
        %587 = vmatmul.mubr.f32.gmra.mrb[0].mxu0 %v517
        %v588 = vpop.f32.mrb[0].mxu0
        %v589 = vadd.f32 %v513, %v588
        %v590 = vpop.f32.mrb[0].mxu0
        %591 = vdwg.mxu0
        %s592 = scalar_lea.vmem %s4, 4
        %v593 = vld [vmem:[%s592] sm:$0xf]
        %v595 = vsel %vm439, %v593, 0
        %597 = vmatprep.subr.mxu0 0.0
        %598 = vmatpush1.msra.mxu0 %v444
        %599 = vmatprep.subr.mxu0 0.0
        %600 = vmatpush1.msra.mxu0 0.0
        %601 = vmatprep.subr.mxu0 0.0
        %602 = vmatpush1.msra.mxu0 0.0
        %603 = vmatprep.subr.mxu0 0.0
        %604 = vmatpush1.msra.mxu0 0.0
        %605 = vmatprep.subr.mxu0 0.0
        %606 = vmatpush1.msra.mxu0 0.0
        %607 = vmatprep.subr.mxu0 0.0
        %608 = vmatpush1.msra.mxu0 0.0
        %609 = vmatprep.subr.mxu0 0.0
        %610 = vmatpush1.msra.mxu0 0.0
        %611 = vmatprep.subr.mxu0 0.0
        %612 = vmatpush1.msra.mxu0 0.0
        %613 = vmatprep.subr.mxu0 0.0
        %614 = vmatpush1.msra.mxu0 0.0
        %615 = vmatprep.subr.mxu0 0.0
        %616 = vmatpush1.msra.mxu0 0.0
        %617 = vmatprep.subr.mxu0 0.0
        %618 = vmatpush1.msra.mxu0 0.0
        %619 = vmatprep.subr.mxu0 0.0
        %620 = vmatpush1.msra.mxu0 0.0
        %621 = vmatprep.subr.mxu0 0.0
        %622 = vmatpush1.msra.mxu0 0.0
        %623 = vmatprep.subr.mxu0 0.0
        %624 = vmatpush1.msra.mxu0 0.0
        %625 = vmatprep.subr.mxu0 0.0
        %626 = vmatpush1.msra.mxu0 0.0
        %627 = vmatprep.subr.mxu0 0.0
        %628 = vmatpush1.msra.mxu0 0.0
        %629 = vmatprep.subr.mxu0 0.0
        %630 = vmatpush1.msra.mxu0 0.0
        %631 = vmatprep.subr.mxu0 0.0
        %632 = vmatpush1.msra.mxu0 0.0
        %633 = vmatprep.subr.mxu0 0.0
        %634 = vmatpush1.msra.mxu0 0.0
        %635 = vmatprep.subr.mxu0 0.0
        %636 = vmatpush1.msra.mxu0 0.0
        %637 = vmatprep.subr.mxu0 0.0
        %638 = vmatpush1.msra.mxu0 0.0
        %639 = vmatprep.subr.mxu0 0.0
        %640 = vmatpush1.msra.mxu0 0.0
        %641 = vmatprep.subr.mxu0 0.0
        %642 = vmatpush1.msra.mxu0 0.0
        %643 = vmatprep.subr.mxu0 0.0
        %644 = vmatpush1.msra.mxu0 0.0
        %645 = vmatprep.subr.mxu0 0.0
        %646 = vmatpush1.msra.mxu0 0.0
        %647 = vmatprep.subr.mxu0 0.0
        %648 = vmatpush1.msra.mxu0 0.0
        %649 = vmatprep.subr.mxu0 0.0
        %650 = vmatpush1.msra.mxu0 0.0
        %651 = vmatprep.subr.mxu0 0.0
        %652 = vmatpush1.msra.mxu0 0.0
        %653 = vmatprep.subr.mxu0 0.0
        %654 = vmatpush1.msra.mxu0 0.0
        %655 = vmatprep.subr.mxu0 0.0
        %656 = vmatpush1.msra.mxu0 0.0
        %657 = vmatprep.subr.mxu0 0.0
        %658 = vmatpush1.msra.mxu0 0.0
        %659 = vmatprep.subr.mxu0 0.0
        %660 = vmatpush1.msra.mxu0 0.0
        %661 = vmatprep.mubr.f32.mxu0 0.0
        %662 = vmatmul.mubr.f32.gmra.mrb[0].mxu0 %v595
        %v663 = vpop.f32.mrb[0].mxu0
        %v664 = vadd.f32 0.0, %v663
        %v665 = vpop.f32.mrb[0].mxu0
        %666 = vdwg.mxu0
        %v668 = vsel %vm439, %v436, 0
        %670 = vmatprep.subr.mxu0 0.0
        %671 = vmatpush1.msra.mxu0 %v520
        %672 = vmatprep.subr.mxu0 0.0
        %673 = vmatpush1.msra.mxu0 0.0
        %674 = vmatprep.subr.mxu0 0.0
        %675 = vmatpush1.msra.mxu0 0.0
        %676 = vmatprep.subr.mxu0 0.0
        %677 = vmatpush1.msra.mxu0 0.0
        %678 = vmatprep.subr.mxu0 0.0
        %679 = vmatpush1.msra.mxu0 0.0
        %680 = vmatprep.subr.mxu0 0.0
        %681 = vmatpush1.msra.mxu0 0.0
        %682 = vmatprep.subr.mxu0 0.0
        %683 = vmatpush1.msra.mxu0 0.0
        %684 = vmatprep.subr.mxu0 0.0
        %685 = vmatpush1.msra.mxu0 0.0
        %686 = vmatprep.subr.mxu0 0.0
        %687 = vmatpush1.msra.mxu0 0.0
        %688 = vmatprep.subr.mxu0 0.0
        %689 = vmatpush1.msra.mxu0 0.0
        %690 = vmatprep.subr.mxu0 0.0
        %691 = vmatpush1.msra.mxu0 0.0
        %692 = vmatprep.subr.mxu0 0.0
        %693 = vmatpush1.msra.mxu0 0.0
        %694 = vmatprep.subr.mxu0 0.0
        %695 = vmatpush1.msra.mxu0 0.0
        %696 = vmatprep.subr.mxu0 0.0
        %697 = vmatpush1.msra.mxu0 0.0
        %698 = vmatprep.subr.mxu0 0.0
        %699 = vmatpush1.msra.mxu0 0.0
        %700 = vmatprep.subr.mxu0 0.0
        %701 = vmatpush1.msra.mxu0 0.0
        %702 = vmatprep.subr.mxu0 0.0
        %703 = vmatpush1.msra.mxu0 0.0
        %704 = vmatprep.subr.mxu0 0.0
        %705 = vmatpush1.msra.mxu0 0.0
        %706 = vmatprep.subr.mxu0 0.0
        %707 = vmatpush1.msra.mxu0 0.0
        %708 = vmatprep.subr.mxu0 0.0
        %709 = vmatpush1.msra.mxu0 0.0
        %710 = vmatprep.subr.mxu0 0.0
        %711 = vmatpush1.msra.mxu0 0.0
        %712 = vmatprep.subr.mxu0 0.0
        %713 = vmatpush1.msra.mxu0 0.0
        %714 = vmatprep.subr.mxu0 0.0
        %715 = vmatpush1.msra.mxu0 0.0
        %716 = vmatprep.subr.mxu0 0.0
        %717 = vmatpush1.msra.mxu0 0.0
        %718 = vmatprep.subr.mxu0 0.0
        %719 = vmatpush1.msra.mxu0 0.0
        %720 = vmatprep.subr.mxu0 0.0
        %721 = vmatpush1.msra.mxu0 0.0
        %722 = vmatprep.subr.mxu0 0.0
        %723 = vmatpush1.msra.mxu0 0.0
        %724 = vmatprep.subr.mxu0 0.0
        %725 = vmatpush1.msra.mxu0 0.0
        %726 = vmatprep.subr.mxu0 0.0
        %727 = vmatpush1.msra.mxu0 0.0
        %728 = vmatprep.subr.mxu0 0.0
        %729 = vmatpush1.msra.mxu0 0.0
        %730 = vmatprep.subr.mxu0 0.0
        %731 = vmatpush1.msra.mxu0 0.0
        %732 = vmatprep.subr.mxu0 0.0
        %733 = vmatpush1.msra.mxu0 0.0
        %734 = vmatprep.mubr.f32.mxu0 0.0
        %735 = vmatmul.mubr.f32.gmra.mrb[0].mxu0 %v668
        %v736 = vpop.f32.mrb[0].mxu0
        %v737 = vadd.f32 %v664, %v736
        %v738 = vpop.f32.mrb[0].mxu0
        %739 = vdwg.mxu0
        %v740 = vld [vmem:[%s406] sm:$0xf]
        %741 = vrot.lane.b32.xlu0 %v414, 127
        %v742 = vpop.permute.xlu0 %741
        %745 = vrot.lane.b32.xlu0 %v740, 127
        %v746 = vpop.permute.xlu0 %745
        %vm748 = vcmask 1039360
        %v749 = vsel %vm748, %v742, %v746
        %s750 = scalar_lea.vmem %s3, 8
        %v751 = vld [vmem:[%s750] sm:$0xf]
        %v753 = vsel %vm439, %v751, 0
        %v756 = vsel %vm443, %v749, 0
        %758 = vmatprep.subr.mxu0 0.0
        %759 = vmatpush1.msra.mxu0 %v756
        %760 = vmatprep.subr.mxu0 0.0
        %761 = vmatpush1.msra.mxu0 0.0
        %762 = vmatprep.subr.mxu0 0.0
        %763 = vmatpush1.msra.mxu0 0.0
        %764 = vmatprep.subr.mxu0 0.0
        %765 = vmatpush1.msra.mxu0 0.0
        %766 = vmatprep.subr.mxu0 0.0
        %767 = vmatpush1.msra.mxu0 0.0
        %768 = vmatprep.subr.mxu0 0.0
        %769 = vmatpush1.msra.mxu0 0.0
        %770 = vmatprep.subr.mxu0 0.0
        %771 = vmatpush1.msra.mxu0 0.0
        %772 = vmatprep.subr.mxu0 0.0
        %773 = vmatpush1.msra.mxu0 0.0
        %774 = vmatprep.subr.mxu0 0.0
        %775 = vmatpush1.msra.mxu0 0.0
        %776 = vmatprep.subr.mxu0 0.0
        %777 = vmatpush1.msra.mxu0 0.0
        %778 = vmatprep.subr.mxu0 0.0
        %779 = vmatpush1.msra.mxu0 0.0
        %780 = vmatprep.subr.mxu0 0.0
        %781 = vmatpush1.msra.mxu0 0.0
        %782 = vmatprep.subr.mxu0 0.0
        %783 = vmatpush1.msra.mxu0 0.0
        %784 = vmatprep.subr.mxu0 0.0
        %785 = vmatpush1.msra.mxu0 0.0
        %786 = vmatprep.subr.mxu0 0.0
        %787 = vmatpush1.msra.mxu0 0.0
        %788 = vmatprep.subr.mxu0 0.0
        %789 = vmatpush1.msra.mxu0 0.0
        %790 = vmatprep.subr.mxu0 0.0
        %791 = vmatpush1.msra.mxu0 0.0
        %792 = vmatprep.subr.mxu0 0.0
        %793 = vmatpush1.msra.mxu0 0.0
        %794 = vmatprep.subr.mxu0 0.0
        %795 = vmatpush1.msra.mxu0 0.0
        %796 = vmatprep.subr.mxu0 0.0
        %797 = vmatpush1.msra.mxu0 0.0
        %798 = vmatprep.subr.mxu0 0.0
        %799 = vmatpush1.msra.mxu0 0.0
        %800 = vmatprep.subr.mxu0 0.0
        %801 = vmatpush1.msra.mxu0 0.0
        %802 = vmatprep.subr.mxu0 0.0
        %803 = vmatpush1.msra.mxu0 0.0
        %804 = vmatprep.subr.mxu0 0.0
        %805 = vmatpush1.msra.mxu0 0.0
        %806 = vmatprep.subr.mxu0 0.0
        %807 = vmatpush1.msra.mxu0 0.0
        %808 = vmatprep.subr.mxu0 0.0
        %809 = vmatpush1.msra.mxu0 0.0
        %810 = vmatprep.subr.mxu0 0.0
        %811 = vmatpush1.msra.mxu0 0.0
        %812 = vmatprep.subr.mxu0 0.0
        %813 = vmatpush1.msra.mxu0 0.0
        %814 = vmatprep.subr.mxu0 0.0
        %815 = vmatpush1.msra.mxu0 0.0
        %816 = vmatprep.subr.mxu0 0.0
        %817 = vmatpush1.msra.mxu0 0.0
        %818 = vmatprep.subr.mxu0 0.0
        %819 = vmatpush1.msra.mxu0 0.0
        %820 = vmatprep.subr.mxu0 0.0
        %821 = vmatpush1.msra.mxu0 0.0
        %822 = vmatprep.mubr.f32.mxu0 0.0
        %823 = vmatmul.mubr.f32.gmra.mrb[0].mxu0 %v753
        %v824 = vpop.f32.mrb[0].mxu0
        %v825 = vadd.f32 0.0, %v824
        %v826 = vpop.f32.mrb[0].mxu0
        %827 = vdwg.mxu0
        %v828 = vadd.f32 %v589, %v825
        %s829 = scalar_lea.vmem %s4, 8
        %v830 = vld [vmem:[%s829] sm:$0xf]
        %v832 = vsel %vm439, %v830, 0
        %834 = vmatprep.subr.mxu0 0.0
        %835 = vmatpush1.msra.mxu0 %v756
        %836 = vmatprep.subr.mxu0 0.0
        %837 = vmatpush1.msra.mxu0 0.0
        %838 = vmatprep.subr.mxu0 0.0
        %839 = vmatpush1.msra.mxu0 0.0
        %840 = vmatprep.subr.mxu0 0.0
        %841 = vmatpush1.msra.mxu0 0.0
        %842 = vmatprep.subr.mxu0 0.0
        %843 = vmatpush1.msra.mxu0 0.0
        %844 = vmatprep.subr.mxu0 0.0
        %845 = vmatpush1.msra.mxu0 0.0
        %846 = vmatprep.subr.mxu0 0.0
        %847 = vmatpush1.msra.mxu0 0.0
        %848 = vmatprep.subr.mxu0 0.0
        %849 = vmatpush1.msra.mxu0 0.0
        %850 = vmatprep.subr.mxu0 0.0
        %851 = vmatpush1.msra.mxu0 0.0
        %852 = vmatprep.subr.mxu0 0.0
        %853 = vmatpush1.msra.mxu0 0.0
        %854 = vmatprep.subr.mxu0 0.0
        %855 = vmatpush1.msra.mxu0 0.0
        %856 = vmatprep.subr.mxu0 0.0
        %857 = vmatpush1.msra.mxu0 0.0
        %858 = vmatprep.subr.mxu0 0.0
        %859 = vmatpush1.msra.mxu0 0.0
        %860 = vmatprep.subr.mxu0 0.0
        %861 = vmatpush1.msra.mxu0 0.0
        %862 = vmatprep.subr.mxu0 0.0
        %863 = vmatpush1.msra.mxu0 0.0
        %864 = vmatprep.subr.mxu0 0.0
        %865 = vmatpush1.msra.mxu0 0.0
        %866 = vmatprep.subr.mxu0 0.0
        %867 = vmatpush1.msra.mxu0 0.0
        %868 = vmatprep.subr.mxu0 0.0
        %869 = vmatpush1.msra.mxu0 0.0
        %870 = vmatprep.subr.mxu0 0.0
        %871 = vmatpush1.msra.mxu0 0.0
        %872 = vmatprep.subr.mxu0 0.0
        %873 = vmatpush1.msra.mxu0 0.0
        %874 = vmatprep.subr.mxu0 0.0
        %875 = vmatpush1.msra.mxu0 0.0
        %876 = vmatprep.subr.mxu0 0.0
        %877 = vmatpush1.msra.mxu0 0.0
        %878 = vmatprep.subr.mxu0 0.0
        %879 = vmatpush1.msra.mxu0 0.0
        %880 = vmatprep.subr.mxu0 0.0
        %881 = vmatpush1.msra.mxu0 0.0
        %882 = vmatprep.subr.mxu0 0.0
        %883 = vmatpush1.msra.mxu0 0.0
        %884 = vmatprep.subr.mxu0 0.0
        %885 = vmatpush1.msra.mxu0 0.0
        %886 = vmatprep.subr.mxu0 0.0
        %887 = vmatpush1.msra.mxu0 0.0
        %888 = vmatprep.subr.mxu0 0.0
        %889 = vmatpush1.msra.mxu0 0.0
        %890 = vmatprep.subr.mxu0 0.0
        %891 = vmatpush1.msra.mxu0 0.0
        %892 = vmatprep.subr.mxu0 0.0
        %893 = vmatpush1.msra.mxu0 0.0
        %894 = vmatprep.subr.mxu0 0.0
        %895 = vmatpush1.msra.mxu0 0.0
        %896 = vmatprep.subr.mxu0 0.0
        %897 = vmatpush1.msra.mxu0 0.0
        %898 = vmatprep.mubr.f32.mxu0 0.0
        %899 = vmatmul.mubr.f32.gmra.mrb[0].mxu0 %v832
        %v900 = vpop.f32.mrb[0].mxu0
        %v901 = vadd.f32 0.0, %v900
        %v902 = vpop.f32.mrb[0].mxu0
        %903 = vdwg.mxu0
        %v904 = vadd.f32 %v737, %v901
        %v905 = vld [vmem:[%s413] sm:$0xf]
        %907 = vset.pattern.permute.xlu0 0
        %908 = vperm.xlu0 %907, %v905
        %v909 = vpop.permute.xlu0 %908
        %v911 = vadd.f32 %v828, %v909
        %v912 = vld [vmem:[%s6] sm:$0xf]
        %914 = vset.pattern.permute.xlu0 0
        %915 = vperm.xlu0 %914, %v912
        %v916 = vpop.permute.xlu0 %915
        %v918 = vadd.f32 %v904, %v916
        %v919 = vxor.u32 %v918, 2147483648
        %v920 = vmul.f32 %v919, 1.442695
        %v921 = vpow.pop %v920
        %v922 = vadd.f32 %v921, 1.0
        %v923 = vrcp.pop %v922
        %v924 = vmul.f32 1.0, %v923
        %v925 = vmul.f32 %v911, %v924
        %v926 = vadd.f32 %v414, %v925
        %v927 = vmul.f32 %v926, 0.70710677
        %928 = vst [vmem:[%s376] sm:$0xf] %v927
        %s929 = sand.u32 %s228, 1
        %s930 = scalar_lea.sflag [#allocation3], %s929
        %s931 = sand.u32 %s228, 1
        %s932 = smul.addr %s931, 4
        %s933 = scalar_lea.vmem [#allocation2], %s932
        // Predicated region
        $region49: #{conditional_conv1d_glu.1} parent=47 // pred_check
          %p934 = pneg %p238
        $region50: #{conditional_conv1d_glu.1} parent=47 // pred_check_branch
          %936 = sbr.rel (%p934) target = $region52
        $region51: #{conditional_conv1d_glu.1} parent=47 // pred_region
          %s938 = ssub.s32 64, 64
          %939 = vsyncadd %s930, %s938
          %s940 = sadd.s32 %s26, %s25
          %s941 = smul.addr %s940, 64
          %s942 = scalar_lea.hbm %s7, %s941
          %s944 = sshll.u32 %s933, 4
          %s945 = int_to_ptr.vmem [resolvable:$true] %s944
          %947 = dma.vmem_to_hbm [thread:$0]  %s945, 64, %s942, %s930
        $region52: #{conditional_conv1d_glu.1} parent=47 // pred_fallthru
          _
      $region48: #{conditional_conv1d_glu.1} parent=5 // pred_fallthru
        _
      %p948 = scmp.le.s32.totalorder 2, %s16
      // Predicated region
      $region53: #{conditional_conv1d_glu.1} parent=5 // pred_check
        %p949 = pneg %p948
      $region54: #{conditional_conv1d_glu.1} parent=5 // pred_check_branch
        %951 = sbr.rel (%p949) target = $region56
      $region55: #{conditional_conv1d_glu.1} parent=5 // pred_region
        %s952 = ssub.s32 %s16, 2
        // Predicated region
        $region57: #{conditional_conv1d_glu.1} parent=55 // pred_check
          %p953 = pneg %p244
        $region58: #{conditional_conv1d_glu.1} parent=55 // pred_check_branch
          %955 = sbr.rel (%p953) target = $region60
        $region59: #{conditional_conv1d_glu.1} parent=55 // pred_region
          %s956 = sand.u32 %s229, 1
          %s957 = scalar_lea.sflag [#allocation3], %s956
          %s958 = sand.u32 %s229, 1
          %s959 = smul.addr %s958, 4
          %s960 = scalar_lea.vmem [#allocation2], %s959
          %961 = dma.done %s957, 64
        $region60: #{conditional_conv1d_glu.1} parent=55 // pred_fallthru
          _
      $region56: #{conditional_conv1d_glu.1} parent=5 // pred_fallthru
        _
    $region6: #{conditional_conv1d_glu.1} parent=1 // loop_footer
      %s20 = sadd.s32 1, %s16
    $region7: #{conditional_conv1d_glu.1} parent=1 // loop_footer_branch
      %15 = sbr.rel target = $region3
    $region8: #{conditional_conv1d_glu.1} parent=1 // loop_exit
      _
    %962 = vsyncpa [#allocation3], 1
    %s963 = scalar_lea.sflag [#allocation3], 1
    %964 = vsyncpa %s963, 1

</llo_original>
